<compile_context>
chip_gen: v7x
topology: tpu7x:2x2x1
jax: 0.10.0
libtpu: 0.0.40
codegen_flags: <defaults>
</compile_context>

<pallas_src>
import numpy as np
import jax
import jax.numpy as jnp
from jax.experimental import pallas as pl
from jax.experimental.pallas import tpu as pltpu


_VMEM_LIMIT_BYTES = 32 * 1024 * 1024    # explicit: v5e default scoped limit is 16 MiB
_WORKING_SET_BYTES = 16 * 1024 * 1024   # double-buffered in+out+mask target
_FUSED_BYTES = 12 * 1024 * 1024         # whole-x-in-VMEM threshold for fused AttrMask


def _round_up(a, b):
    return (a + b - 1) // b * b


def _sublane(dtype):
    return {4: 8, 2: 16, 1: 32}.get(jnp.dtype(dtype).itemsize, 8)


def _packing(n, f):
    """Lane-dense packing factor k (rows per packed row) and padded mask lanes kp."""
    if f >= 128 or 128 % f != 0:
        return 1, 1
    k = 128 // f
    if n % k != 0:
        return 1, 1   # TODO(synk): pack divisible prefix + scalar tail
    return k, max(k, 8)   # pad mask lane dim to >= 8 so the expand matmul is well-shaped


def _pick_tile_n(n_rows, row_elems, dtype):
    """Byte-targeted row tile; accounts for the lane-padded mask stream."""
    itemsize = jnp.dtype(dtype).itemsize
    sub = _sublane(dtype)
    # double-buffered x-in + x-out blocks + double-buffered mask (lane-padded to 128)
    per_row = (4 * row_elems + 2 * 128) * itemsize
    t = _WORKING_SET_BYTES // max(per_row, 1)
    # keep >= ~4 grid steps on big arrays (megacore sharding on v7x + pipelining)
    t = min(t, max(sub, _round_up(pl.cdiv(n_rows, 4), sub)))
    # ...but never drop below ~512 KiB per x block (0.35 us per-step overhead)
    min_rows = (512 * 1024) // max(row_elems * itemsize, 1)
    t = max(t, min_rows)
    t = min(t, _round_up(n_rows, sub))
    return int(max(sub, (t // sub) * sub))


def _fits_fused(n_rows, row_elems, itemsize):
    # x in + x out + lane-padded mask, with headroom for temporaries
    return (2 * n_rows * row_elems + n_rows * 128) * itemsize <= _FUSED_BYTES


# ----------------------------- Pallas kernels ------------------------------ #

def _attrmask_kernel(x_ref, token_ref, mask_ref, o_ref):
    # x[mask_rows] = token (token precomputed in the wrapper, x.dtype).
    x = x_ref[...]                       # [T, F]
    token = token_ref[...]               # [1, F]
    m = mask_ref[...]                    # [T, 1] {0,1} in x.dtype (broadcasts on lanes)
    o_ref[...] = jnp.where(m != 0, token, x)


def _attrmask_packed_kernel(x_ref, token_ref, mask_ref, expand_ref, o_ref):
    # Lane-packed: x is [T, k*F]; the [T, kp] per-sub-row mask is expanded to
    # [T, k*F] with a tiny MXU matmul against a constant 0/1 matrix.
    m_full = jnp.dot(mask_ref[...], expand_ref[...],
                     preferred_element_type=jnp.float32)      # [T, k*F] exact 0/1
    o_ref[...] = jnp.where(m_full != 0, token_ref[...], x_ref[...])


def _zero_rows_kernel(x_ref, keep_ref, o_ref):
    # x[drop_rows] = 0  ==  x * keep_mask (keep_mask in x.dtype).
    o_ref[...] = x_ref[...] * keep_ref[...]


def _zero_rows_packed_kernel(x_ref, keep_ref, expand_ref, o_ref):
    k_full = jnp.dot(keep_ref[...], expand_ref[...],
                     preferred_element_type=jnp.float32)
    o_ref[...] = x_ref[...] * k_full.astype(o_ref.dtype)


def _make_attrmask_fused_kernel(n_total, feat, k):
    """Single-block AttrMask: mean token computed in-kernel (no extra HBM pass).

    Safe because the single block equals the full (logical) array, so the
    cross-row reduction never sees ragged/garbage rows.
    """
    inv_n = 1.0 / float(n_total)
    if k == 1:
        def kernel(x_ref, mask_ref, o_ref):
            x = x_ref[...]
            token = (jnp.sum(x.astype(jnp.float32), axis=0, keepdims=True)
                     * inv_n).astype(x.dtype)                    # [1, F]
            o_ref[...] = jnp.where(mask_ref[...] != 0, token, x)
        return kernel

    def kernel(x_ref, mask_ref, expand_ref, o_ref):
        x = x_ref[...]                                           # [N//k, k*F]
        colsum = jnp.sum(x.astype(jnp.float32), axis=0, keepdims=True)  # [1, k*F]
        tok = colsum
        for j in range(1, k):            # pool the k sub-columns per feature (XLU rolls)
            tok = tok + pltpu.roll(colsum, shift=j * feat, axis=1)
        token = (tok * inv_n).astype(x.dtype)                    # [1, k*F], already tiled
        m_full = jnp.dot(mask_ref[...], expand_ref[...],
                         preferred_element_type=jnp.float32)
        o_ref[...] = jnp.where(m_full != 0, token, x)
    return kernel


# ----------------------------- kernel wrappers ------------------------------ #

def _prepare(x, row_mask):
    """Shared packing / mask shaping for both apply paths."""
    N, F = x.shape
    k, kp = _packing(N, F)
    n_rows, row_elems = N // k, k * F
    x_p = x.reshape(n_rows, row_elems) if k > 1 else x           # contiguous, free reshape
    mask2 = row_mask.astype(x.dtype).reshape(n_rows, k)
    expand = None
    if k > 1:
        if kp > k:
            mask2 = jnp.pad(mask2, ((0, 0), (0, kp - k)))
        expand = jnp.repeat(jnp.eye(k, dtype=x.dtype), F, axis=1)    # [k, k*F]
        if kp > k:
            expand = jnp.pad(expand, ((0, kp - k), (0, 0)))          # [kp, k*F]
    return k, kp, n_rows, row_elems, x_p, mask2, expand


def _compiler_params():
    return pltpu.CompilerParams(dimension_semantics=("parallel",),
                                vmem_limit_bytes=_VMEM_LIMIT_BYTES)


def _cost(n_rows, row_elems, kp, itemsize):
    return pl.CostEstimate(
        flops=2 * n_rows * row_elems,
        transcendentals=0,
        bytes_accessed=(2 * n_rows * row_elems + n_rows * kp
                        + row_elems * (1 + kp)) * itemsize)


def attrmask_apply(x, row_mask, *, tile_n=None, force_tiled=False):
    """x with rows where row_mask != 0 replaced by mean(x, axis=0). row_mask: [N]."""
    N, F = x.shape
    itemsize = jnp.dtype(x.dtype).itemsize
    k, kp, n_rows, row_elems, x_p, mask2, expand = _prepare(x, row_mask)

    if not force_tiled and _fits_fused(n_rows, row_elems, itemsize):
        # Small graph: whole x lives in VMEM, mean token fused into the kernel.
        kernel = _make_attrmask_fused_kernel(N, F, k)
        args = (x_p, mask2) if k == 1 else (x_p, mask2, expand)
        out = pl.pallas_call(
            kernel,
            out_shape=jax.ShapeDtypeStruct(x_p.shape, x.dtype),
            compiler_params=pltpu.CompilerParams(vmem_limit_bytes=_VMEM_LIMIT_BYTES),
        )(*args)
        return out.reshape(N, F) if k > 1 else out

    # Large graph: token hoisted (one extra HBM read of x, unavoidable once tiled).
    token = jnp.mean(x.astype(jnp.float32), axis=0, keepdims=True).astype(x.dtype)
    token_p = jnp.tile(token, (1, k)) if k > 1 else token

    if tile_n is None:
        tile_n = _pick_tile_n(n_rows, row_elems, x.dtype)
    sub = _sublane(x.dtype)
    tile_n = max(sub, (min(int(tile_n), _round_up(n_rows, sub)) // sub) * sub)
    grid = (pl.cdiv(n_rows, tile_n),)
    cost = _cost(n_rows, row_elems, kp, itemsize)

    x_spec = pl.BlockSpec((tile_n, row_elems), lambda i: (i, 0))
    tok_spec = pl.BlockSpec((1, row_elems), lambda i: (0, 0))
    mask_spec = pl.BlockSpec((tile_n, kp), lambda i: (i, 0))
    out_spec = pl.BlockSpec((tile_n, row_elems), lambda i: (i, 0))

    if k == 1:
        out = pl.pallas_call(
            _attrmask_kernel,
            out_shape=jax.ShapeDtypeStruct((n_rows, row_elems), x.dtype),
            grid=grid,
            in_specs=[x_spec, tok_spec, mask_spec],
            out_specs=out_spec,
            compiler_params=_compiler_params(),
            cost_estimate=cost,
        )(x_p, token_p, mask2)
        return out

    exp_spec = pl.BlockSpec((kp, row_elems), lambda i: (0, 0))
    out = pl.pallas_call(
        _attrmask_packed_kernel,
        out_shape=jax.ShapeDtypeStruct((n_rows, row_elems), x.dtype),
        grid=grid,
        in_specs=[x_spec, tok_spec, mask_spec, exp_spec],
        out_specs=out_spec,
        compiler_params=_compiler_params(),
        cost_estimate=cost,
    )(x_p, token_p, mask2, expand)
    return out.reshape(N, F)


def zero_rows_apply(x, keep_rows, *, tile_n=None):
    """x with rows where keep_rows == 0 zeroed out. keep_rows: [N]."""
    N, F = x.shape
    itemsize = jnp.dtype(x.dtype).itemsize
    k, kp, n_rows, row_elems, x_p, keep2, expand = _prepare(x, keep_rows)

    if tile_n is None:
        tile_n = _pick_tile_n(n_rows, row_elems, x.dtype)
    sub = _sublane(x.dtype)
    tile_n = max(sub, (min(int(tile_n), _round_up(n_rows, sub)) // sub) * sub)
    grid = (pl.cdiv(n_rows, tile_n),)
    cost = _cost(n_rows, row_elems, kp, itemsize)

    x_spec = pl.BlockSpec((tile_n, row_elems), lambda i: (i, 0))
    keep_spec = pl.BlockSpec((tile_n, kp), lambda i: (i, 0))
    out_spec = pl.BlockSpec((tile_n, row_elems), lambda i: (i, 0))

    if k == 1:
        out = pl.pallas_call(
            _zero_rows_kernel,
            out_shape=jax.ShapeDtypeStruct((n_rows, row_elems), x.dtype),
            grid=grid,
            in_specs=[x_spec, keep_spec],
            out_specs=out_spec,
            compiler_params=_compiler_params(),
            cost_estimate=cost,
        )(x_p, keep2)
        return out

    exp_spec = pl.BlockSpec((kp, row_elems), lambda i: (0, 0))
    out = pl.pallas_call(
        _zero_rows_packed_kernel,
        out_shape=jax.ShapeDtypeStruct((n_rows, row_elems), x.dtype),
        grid=grid,
        in_specs=[x_spec, keep_spec, exp_spec],
        out_specs=out_spec,
        compiler_params=_compiler_params(),
        cost_estimate=cost,
    )(x_p, keep2, expand)
    return out.reshape(N, F)


# --------------------------- augmentation glue ----------------------------- #

def AttrMask(data, aug_ratio, key):
    x = data["x"]
    N = data["num_nodes"]
    mask_num = max(1, int(N * aug_ratio))
    # multinomial over uniform weights with replacement == uniform randint
    mask_idx = jax.random.randint(key, (mask_num,), 0, N)
    row_mask = jnp.zeros((N,), x.dtype).at[mask_idx].set(1)
    out = dict(data)
    out["x"] = attrmask_apply(x, row_mask)
    return out


def NodeDrop(data, aug_ratio, key):
    x = data["x"]
    N = data["num_nodes"]
    drop_num = int(N * aug_ratio)
    keep_num = N - drop_num
    perm = jax.random.permutation(key, N)
    keep_idx = perm[:keep_num]
    keep_vec = jnp.zeros((N,), jnp.bool_).at[keep_idx].set(True)
    out = dict(data)
    out["x"] = zero_rows_apply(x, keep_vec)
    ei = data["edge_index"]
    # TODO(synk): torch_geometric.subgraph compacts edge_index to a dynamic
    # shape; with static shapes we keep edge_index and return a validity mask.
    out["edge_mask"] = keep_vec[ei[0]] & keep_vec[ei[1]]
    return out


def EdgePerturb(data, aug_ratio, key):
    ei = data["edge_index"]
    N = data["num_nodes"]
    E = ei.shape[1]
    permute_num = max(1, int(E * aug_ratio))
    k_add, k_keep = jax.random.split(key)
    # unif(2, N).multinomial(permute_num, replacement=True)
    add_edge_idx = jax.random.randint(k_add, (2, permute_num), 0, N).astype(ei.dtype)
    # torch reference samples the kept edges WITH replacement too -> uniform randint
    n_keep = E - permute_num if (E - permute_num) > 0 else 1
    keep_edge_idx = jax.random.randint(k_keep, (n_keep,), 0, E)
    out = dict(data)
    out["edge_index"] = jnp.concatenate([ei[:, keep_edge_idx], add_edge_idx], axis=1)
    return out


def Subgraph(data, aug_ratio, key):
    x = data["x"]
    ei = data["edge_index"]
    N = data["num_nodes"]
    sub_num = max(1, int(N * aug_ratio))
    k_start, k_tie = jax.random.split(key)
    start = jax.random.randint(k_start, (), 0, N)

    INF = jnp.int32(N + 1)
    hop = jnp.full((N,), INF, jnp.int32).at[start].set(0)

    def body(k, hop):
        cur = (hop < INF).astype(jnp.int32)
        nbr = jnp.zeros((N,), jnp.int32)
        nbr = nbr.at[ei[1]].max(cur[ei[0]])
        nbr = nbr.at[ei[0]].max(cur[ei[1]])
        newly = (nbr > 0) & (hop >= INF)
        return jnp.where(newly, k, hop)

    # up to sub_num - 1 one-hop expansions (mirrors the k-hop loop)
    hop = jax.lax.fori_loop(1, sub_num, body, hop)

    # keep all lower-hop nodes first, random tie-break inside the newest hop,
    # truncated to sub_num nodes (mirrors last_idx + random subset of `diff`).
    # TODO(synk): the exact early-break / unique-diff bookkeeping of the torch
    # version needs dynamic shapes; this static boolean-mask BFS approximates it.
    tie = jax.random.uniform(k_tie, (N,))
    order = jnp.argsort(hop.astype(jnp.float32) + tie)
    ranks = jnp.argsort(order)
    keep_vec = (ranks < sub_num) & (hop < INF)

    out = dict(data)
    out["x"] = zero_rows_apply(x, keep_vec)
    out["edge_mask"] = keep_vec[ei[0]] & keep_vec[ei[1]]
    return out


class Augmentor:
    """Mirrors the torch Augmentor: picks one of 4 augmentations at random."""

    def __init__(self, aug_ratio, preset=-1):
        self.aug_ratio = aug_ratio
        self.aug = preset

    def __call__(self, data, key):
        self.aug = int(np.random.randint(4))  # host-side choice, as in torch
        if self.aug == 0:
            return NodeDrop(data, self.aug_ratio, key)
        elif self.aug == 1:
            return Subgraph(data, self.aug_ratio, key)
        elif self.aug == 2:
            return EdgePerturb(data, self.aug_ratio, key)
        elif self.aug == 3:
            return AttrMask(data, self.aug_ratio, key)
        else:
            raise AssertionError("sample augmentation error")


# --------------------------------- demo ------------------------------------ #

if __name__ == "__main__":
    np.random.seed(0)
    key = jax.random.PRNGKey(0)
    kx, ke, kf = jax.random.split(key, 3)

    N, F, E = 520, 128, 2048
    x = jax.random.normal(kx, (N, F), jnp.float32)
    edge_index = jax.random.randint(ke, (2, E), 0, N).astype(jnp.int32)
    data = {"x": x, "edge_index": edge_index, "num_nodes": N}

    aug = Augmentor(aug_ratio=0.2)
    out = aug(data, kf)
    jax.block_until_ready(out["x"])

    # Exercise every augmentation branch regardless of the sampled one.
    k1, k2, k3, km, kk = jax.random.split(kf, 5)
    out_mask = AttrMask(data, 0.2, k1)
    out_drop = NodeDrop(data, 0.2, k2)
    out_sub = Subgraph(data, 0.2, k3)
    jax.block_until_ready((out_mask["x"], out_drop["x"], out_sub["x"]))

    # --------- correctness checks of every Pallas path vs pure-jnp refs ------
    def ref_attrmask(xv, rm):
        token = jnp.mean(xv.astype(jnp.float32), axis=0, keepdims=True).astype(xv.dtype)
        return jnp.where(rm[:, None] != 0, token, xv)

    def ref_zero(xv, kp_):
        return xv * kp_[:, None].astype(xv.dtype)

    row_mask = (jax.random.uniform(km, (N,)) < 0.2).astype(jnp.float32)
    keep = (jax.random.uniform(kk, (N,)) < 0.8).astype(jnp.float32)

    # F = 128 (k == 1): fused path + multi-step tiled path with ragged last block.
    ref = ref_attrmask(x, row_mask)
    got_f = attrmask_apply(x, row_mask)                                  # fused
    got_t = attrmask_apply(x, row_mask, tile_n=128, force_tiled=True)    # tiled, grid=5
    assert bool(jnp.allclose(got_f, ref, atol=1e-5, rtol=1e-5)), "AttrMask fused mismatch"
    assert bool(jnp.allclose(got_t, ref, atol=1e-5, rtol=1e-5)), "AttrMask tiled mismatch"

    got_z = zero_rows_apply(x, keep, tile_n=128)
    assert bool(jnp.allclose(got_z, ref_zero(x, keep))), "zero-rows kernel mismatch"

    # F = 64 (k=2) and F = 32 (k=4): lane-dense packed kernels, ragged grids.
    for Fs in (64, 32):
        xs = jax.random.normal(jax.random.fold_in(kx, Fs), (N, Fs), jnp.float32)
        refp = ref_attrmask(xs, row_mask)
        got_pf = attrmask_apply(xs, row_mask)                                   # fused packed
        got_pt = attrmask_apply(xs, row_mask, tile_n=64, force_tiled=True)      # tiled packed
        assert bool(jnp.allclose(got_pf, refp, atol=1e-5, rtol=1e-5)), f"packed fused F={Fs}"
        assert bool(jnp.allclose(got_pt, refp, atol=1e-5, rtol=1e-5)), f"packed tiled F={Fs}"
        got_pz = zero_rows_apply(xs, keep, tile_n=64)
        assert bool(jnp.allclose(got_pz, ref_zero(xs, keep))), f"packed zero F={Fs}"

    print("KERNEL_OK")
</pallas_src>

<mosaic_0001>
module attributes {stable_mosaic.version = 11 : i64} {
  func.func @_zero_rows_kernel(%arg0: i32, %arg1: memref<520x128xf32, #tpu.memory_space<vmem>>, %arg2: memref<520x1xf32, #tpu.memory_space<vmem>>, %arg3: memref<520x128xf32, #tpu.memory_space<vmem>>) attributes {dimension_semantics = [#tpu.dimension_semantics<parallel>], iteration_bounds = array<i64: 1>, scalar_prefetch = 0 : i64, scratch_operands = 0 : i64, tpu.core_type = #tpu.core_type<tc>, window_params = [{transform_indices = @transform_0, window_bounds = array<i64: 520, 128>}, {transform_indices = @transform_1, window_bounds = array<i64: 520, 1>}, {transform_indices = @transform_2, window_bounds = array<i64: 520, 128>}]} {
    %c0 = arith.constant 0 : index
    %c0_0 = arith.constant 0 : index
    %0 = vector.load %arg1[%c0, %c0_0] : memref<520x128xf32, #tpu.memory_space<vmem>>, vector<520x128xf32>
    %c0_1 = arith.constant 0 : index
    %c0_2 = arith.constant 0 : index
    %1 = vector.load %arg2[%c0_1, %c0_2] : memref<520x1xf32, #tpu.memory_space<vmem>>, vector<520x1xf32>
    %2 = vector.broadcast %1 : vector<520x1xf32> to vector<520x128xf32>
    %3 = arith.mulf %0, %2 : vector<520x128xf32>
    %c0_3 = arith.constant 0 : index
    %c0_4 = arith.constant 0 : index
    %4 = vector.load %arg3[%c0_3, %c0_4] : memref<520x128xf32, #tpu.memory_space<vmem>>, vector<520x128xf32>
    tpu.vector_store %arg3[%c0_3, %c0_4], %3 {strides = array<i32>} : memref<520x128xf32, #tpu.memory_space<vmem>>, vector<520x128xf32>,
    return
  }
  func.func @transform_0(%arg0: i32) -> (i32, i32) {
    %c0_i32 = arith.constant 0 : i32
    %c0_i32_0 = arith.constant 0 : i32
    return %arg0, %c0_i32 : i32, i32
  }
  func.func @transform_1(%arg0: i32) -> (i32, i32) {
    %c0_i32 = arith.constant 0 : i32
    %c0_i32_0 = arith.constant 0 : i32
    return %arg0, %c0_i32 : i32, i32
  }
  func.func @transform_2(%arg0: i32) -> (i32, i32) {
    %c0_i32 = arith.constant 0 : i32
    %c0_i32_0 = arith.constant 0 : i32
    return %arg0, %c0_i32 : i32, i32
  }
}

</mosaic_0001>

<llo_original>
// kernel: tpu_custom_call.1
$region0: #{tpu_custom_call.1}
  #allocation0 [shape = 'u32[]', space=smem, size = 0x4, offset = 0x4, fixed_abs, tag = 'smem constant byte address 0x4 - core index']
  #allocation1 [shape = 'u32[144,128]{1,0:T(1,128)}', space=vmem, size = 0x12000, scoped, tag = 'internal scratch']
  %s0 = inlined_call_operand.vmem [shape: f32[520,128], index: 0, kind: input, shape index: {}]
  %s1 = inlined_call_operand.vmem [shape: f32[520,1], index: 1, kind: input, shape index: {}]
  %s2 = inlined_call_operand.hbm [shape: f32[520,128], index: 2, kind: output, shape index: {}]
  %s3 = sld [smem:[#allocation0]]
  $region18: #{tpu_custom_call.1} parent=0
    _
  %s5 = ssub.s32 1, %s3
  %s6 = scalar_select 0, %s5, %s3
  $region1: #{tpu_custom_call.1} parent=0
    #allocation2 [shape = 'u8[266240]{0}', space=vmem, size = 0x41000, scoped, tag = 'output window, operand 0, single buffered']
    #allocation3 [shape = 's32[1]{0}', space=sflag, size = 0x4, scoped, tag = 'scoped memory for tpu_custom_call.1']
    %7 = vsyncpa [#allocation3], 0
    // Predicated region
    $region2: #{tpu_custom_call.1} parent=1 // pred_check
      _
    $region3: #{tpu_custom_call.1} parent=1 // pred_check_branch
      %9 = sbr.rel (0) target = $region5
    $region4: #{tpu_custom_call.1} parent=1 // pred_region
      _
    $region5: #{tpu_custom_call.1} parent=1 // pred_fallthru
      _
    // Predicated region
    $region6: #{tpu_custom_call.1} parent=1 // pred_check
      _
    $region7: #{tpu_custom_call.1} parent=1 // pred_check_branch
      %11 = sbr.rel (0) target = $region9
    $region8: #{tpu_custom_call.1} parent=1 // pred_region
      _
    $region9: #{tpu_custom_call.1} parent=1 // pred_fallthru
      _
    %v12 = vld [vmem:[%s0] sm:$0xff]
    %v13 = vld [vmem:[%s0 + $0x8] sm:$0xff]
    %v14 = vld [vmem:[%s0 + $0x10] sm:$0xff]
    %v15 = vld [vmem:[%s0 + $0x18] sm:$0xff]
    %v16 = vld [vmem:[%s0 + $0x20] sm:$0xff]
    %v17 = vld [vmem:[%s0 + $0x28] sm:$0xff]
    %v18 = vld [vmem:[%s0 + $0x30] sm:$0xff]
    %v19 = vld [vmem:[%s0 + $0x38] sm:$0xff]
    %v20 = vld [vmem:[%s0 + $0x40] sm:$0xff]
    %v21 = vld [vmem:[%s0 + $0x48] sm:$0xff]
    %v22 = vld [vmem:[%s0 + $0x50] sm:$0xff]
    %v23 = vld [vmem:[%s0 + $0x58] sm:$0xff]
    %v24 = vld [vmem:[%s0 + $0x60] sm:$0xff]
    %v25 = vld [vmem:[%s0 + $0x68] sm:$0xff]
    %v26 = vld [vmem:[%s0 + $0x70] sm:$0xff]
    %v27 = vld [vmem:[%s0 + $0x78] sm:$0xff]
    %v28 = vld [vmem:[%s0 + $0x80] sm:$0xff]
    %v29 = vld [vmem:[%s0 + $0x88] sm:$0xff]
    %v30 = vld [vmem:[%s0 + $0x90] sm:$0xff]
    %v31 = vld [vmem:[%s0 + $0x98] sm:$0xff]
    %v32 = vld [vmem:[%s0 + $0xa0] sm:$0xff]
    %v33 = vld [vmem:[%s0 + $0xa8] sm:$0xff]
    %v34 = vld [vmem:[%s0 + $0xb0] sm:$0xff]
    %v35 = vld [vmem:[%s0 + $0xb8] sm:$0xff]
    %v36 = vld [vmem:[%s0 + $0xc0] sm:$0xff]
    %v37 = vld [vmem:[%s0 + $0xc8] sm:$0xff]
    %v38 = vld [vmem:[%s0 + $0xd0] sm:$0xff]
    %v39 = vld [vmem:[%s0 + $0xd8] sm:$0xff]
    %v40 = vld [vmem:[%s0 + $0xe0] sm:$0xff]
    %v41 = vld [vmem:[%s0 + $0xe8] sm:$0xff]
    %v42 = vld [vmem:[%s0 + $0xf0] sm:$0xff]
    %v43 = vld [vmem:[%s0 + $0xf8] sm:$0xff]
    %v44 = vld [vmem:[%s0 + $0x100] sm:$0xff]
    %v45 = vld [vmem:[%s0 + $0x108] sm:$0xff]
    %v46 = vld [vmem:[%s0 + $0x110] sm:$0xff]
    %v47 = vld [vmem:[%s0 + $0x118] sm:$0xff]
    %v48 = vld [vmem:[%s0 + $0x120] sm:$0xff]
    %v49 = vld [vmem:[%s0 + $0x128] sm:$0xff]
    %v50 = vld [vmem:[%s0 + $0x130] sm:$0xff]
    %v51 = vld [vmem:[%s0 + $0x138] sm:$0xff]
    %v52 = vld [vmem:[%s0 + $0x140] sm:$0xff]
    %v53 = vld [vmem:[%s0 + $0x148] sm:$0xff]
    %v54 = vld [vmem:[%s0 + $0x150] sm:$0xff]
    %v55 = vld [vmem:[%s0 + $0x158] sm:$0xff]
    %v56 = vld [vmem:[%s0 + $0x160] sm:$0xff]
    %v57 = vld [vmem:[%s0 + $0x168] sm:$0xff]
    %v58 = vld [vmem:[%s0 + $0x170] sm:$0xff]
    %v59 = vld [vmem:[%s0 + $0x178] sm:$0xff]
    %v60 = vld [vmem:[%s0 + $0x180] sm:$0xff]
    %v61 = vld [vmem:[%s0 + $0x188] sm:$0xff]
    %v62 = vld [vmem:[%s0 + $0x190] sm:$0xff]
    %v63 = vld [vmem:[%s0 + $0x198] sm:$0xff]
    %v64 = vld [vmem:[%s0 + $0x1a0] sm:$0xff]
    %v65 = vld [vmem:[%s0 + $0x1a8] sm:$0xff]
    %v66 = vld [vmem:[%s0 + $0x1b0] sm:$0xff]
    %v67 = vld [vmem:[%s0 + $0x1b8] sm:$0xff]
    %v68 = vld [vmem:[%s0 + $0x1c0] sm:$0xff]
    %v69 = vld [vmem:[%s0 + $0x1c8] sm:$0xff]
    %v70 = vld [vmem:[%s0 + $0x1d0] sm:$0xff]
    %v71 = vld [vmem:[%s0 + $0x1d8] sm:$0xff]
    %v72 = vld [vmem:[%s0 + $0x1e0] sm:$0xff]
    %v73 = vld [vmem:[%s0 + $0x1e8] sm:$0xff]
    %v74 = vld [vmem:[%s0 + $0x1f0] sm:$0xff]
    %v75 = vld [vmem:[%s0 + $0x1f8] sm:$0xff]
    %v76 = vld [vmem:[%s0 + $0x200] sm:$0xff]
    %v77 = vld [vmem:[%s1] sm:$0xff]
    %v78 = vld [vmem:[%s1 + $0x8] sm:$0xff]
    %v79 = vld [vmem:[%s1 + $0x10] sm:$0xff]
    %v80 = vld [vmem:[%s1 + $0x18] sm:$0xff]
    %v81 = vld [vmem:[%s1 + $0x20] sm:$0xff]
    %v82 = vld [vmem:[%s1 + $0x28] sm:$0xff]
    %v83 = vld [vmem:[%s1 + $0x30] sm:$0xff]
    %v84 = vld [vmem:[%s1 + $0x38] sm:$0xff]
    %v85 = vld [vmem:[%s1 + $0x40] sm:$0xff]
    %v86 = vld [vmem:[%s1 + $0x48] sm:$0xff]
    %v87 = vld [vmem:[%s1 + $0x50] sm:$0xff]
    %v88 = vld [vmem:[%s1 + $0x58] sm:$0xff]
    %v89 = vld [vmem:[%s1 + $0x60] sm:$0xff]
    %v90 = vld [vmem:[%s1 + $0x68] sm:$0xff]
    %v91 = vld [vmem:[%s1 + $0x70] sm:$0xff]
    %v92 = vld [vmem:[%s1 + $0x78] sm:$0xff]
    %v93 = vld [vmem:[%s1 + $0x80] sm:$0xff]
    %v94 = vld [vmem:[%s1 + $0x88] sm:$0xff]
    %v95 = vld [vmem:[%s1 + $0x90] sm:$0xff]
    %v96 = vld [vmem:[%s1 + $0x98] sm:$0xff]
    %v97 = vld [vmem:[%s1 + $0xa0] sm:$0xff]
    %v98 = vld [vmem:[%s1 + $0xa8] sm:$0xff]
    %v99 = vld [vmem:[%s1 + $0xb0] sm:$0xff]
    %v100 = vld [vmem:[%s1 + $0xb8] sm:$0xff]
    %v101 = vld [vmem:[%s1 + $0xc0] sm:$0xff]
    %v102 = vld [vmem:[%s1 + $0xc8] sm:$0xff]
    %v103 = vld [vmem:[%s1 + $0xd0] sm:$0xff]
    %v104 = vld [vmem:[%s1 + $0xd8] sm:$0xff]
    %v105 = vld [vmem:[%s1 + $0xe0] sm:$0xff]
    %v106 = vld [vmem:[%s1 + $0xe8] sm:$0xff]
    %v107 = vld [vmem:[%s1 + $0xf0] sm:$0xff]
    %v108 = vld [vmem:[%s1 + $0xf8] sm:$0xff]
    %v109 = vld [vmem:[%s1 + $0x100] sm:$0xff]
    %v110 = vld [vmem:[%s1 + $0x108] sm:$0xff]
    %v111 = vld [vmem:[%s1 + $0x110] sm:$0xff]
    %v112 = vld [vmem:[%s1 + $0x118] sm:$0xff]
    %v113 = vld [vmem:[%s1 + $0x120] sm:$0xff]
    %v114 = vld [vmem:[%s1 + $0x128] sm:$0xff]
    %v115 = vld [vmem:[%s1 + $0x130] sm:$0xff]
    %v116 = vld [vmem:[%s1 + $0x138] sm:$0xff]
    %v117 = vld [vmem:[%s1 + $0x140] sm:$0xff]
    %v118 = vld [vmem:[%s1 + $0x148] sm:$0xff]
    %v119 = vld [vmem:[%s1 + $0x150] sm:$0xff]
    %v120 = vld [vmem:[%s1 + $0x158] sm:$0xff]
    %v121 = vld [vmem:[%s1 + $0x160] sm:$0xff]
    %v122 = vld [vmem:[%s1 + $0x168] sm:$0xff]
    %v123 = vld [vmem:[%s1 + $0x170] sm:$0xff]
    %v124 = vld [vmem:[%s1 + $0x178] sm:$0xff]
    %v125 = vld [vmem:[%s1 + $0x180] sm:$0xff]
    %v126 = vld [vmem:[%s1 + $0x188] sm:$0xff]
    %v127 = vld [vmem:[%s1 + $0x190] sm:$0xff]
    %v128 = vld [vmem:[%s1 + $0x198] sm:$0xff]
    %v129 = vld [vmem:[%s1 + $0x1a0] sm:$0xff]
    %v130 = vld [vmem:[%s1 + $0x1a8] sm:$0xff]
    %v131 = vld [vmem:[%s1 + $0x1b0] sm:$0xff]
    %v132 = vld [vmem:[%s1 + $0x1b8] sm:$0xff]
    %v133 = vld [vmem:[%s1 + $0x1c0] sm:$0xff]
    %v134 = vld [vmem:[%s1 + $0x1c8] sm:$0xff]
    %v135 = vld [vmem:[%s1 + $0x1d0] sm:$0xff]
    %v136 = vld [vmem:[%s1 + $0x1d8] sm:$0xff]
    %v137 = vld [vmem:[%s1 + $0x1e0] sm:$0xff]
    %v138 = vld [vmem:[%s1 + $0x1e8] sm:$0xff]
    %v139 = vld [vmem:[%s1 + $0x1f0] sm:$0xff]
    %v140 = vld [vmem:[%s1 + $0x1f8] sm:$0xff]
    %v141 = vld [vmem:[%s1 + $0x200] sm:$0xff]
    %143 = vset.pattern.permute.xlu0 0
    %144 = vperm.xlu0 %143, %v77
    %v145 = vpop.permute.xlu0 %144
    %148 = vset.pattern.permute.xlu0 0
    %149 = vperm.xlu0 %148, %v78
    %v150 = vpop.permute.xlu0 %149
    %153 = vset.pattern.permute.xlu0 0
    %154 = vperm.xlu0 %153, %v79
    %v155 = vpop.permute.xlu0 %154
    %158 = vset.pattern.permute.xlu0 0
    %159 = vperm.xlu0 %158, %v80
    %v160 = vpop.permute.xlu0 %159
    %163 = vset.pattern.permute.xlu0 0
    %164 = vperm.xlu0 %163, %v81
    %v165 = vpop.permute.xlu0 %164
    %168 = vset.pattern.permute.xlu0 0
    %169 = vperm.xlu0 %168, %v82
    %v170 = vpop.permute.xlu0 %169
    %173 = vset.pattern.permute.xlu0 0
    %174 = vperm.xlu0 %173, %v83
    %v175 = vpop.permute.xlu0 %174
    %178 = vset.pattern.permute.xlu0 0
    %179 = vperm.xlu0 %178, %v84
    %v180 = vpop.permute.xlu0 %179
    %183 = vset.pattern.permute.xlu0 0
    %184 = vperm.xlu0 %183, %v85
    %v185 = vpop.permute.xlu0 %184
    %188 = vset.pattern.permute.xlu0 0
    %189 = vperm.xlu0 %188, %v86
    %v190 = vpop.permute.xlu0 %189
    %193 = vset.pattern.permute.xlu0 0
    %194 = vperm.xlu0 %193, %v87
    %v195 = vpop.permute.xlu0 %194
    %198 = vset.pattern.permute.xlu0 0
    %199 = vperm.xlu0 %198, %v88
    %v200 = vpop.permute.xlu0 %199
    %203 = vset.pattern.permute.xlu0 0
    %204 = vperm.xlu0 %203, %v89
    %v205 = vpop.permute.xlu0 %204
    %208 = vset.pattern.permute.xlu0 0
    %209 = vperm.xlu0 %208, %v90
    %v210 = vpop.permute.xlu0 %209
    %213 = vset.pattern.permute.xlu0 0
    %214 = vperm.xlu0 %213, %v91
    %v215 = vpop.permute.xlu0 %214
    %218 = vset.pattern.permute.xlu0 0
    %219 = vperm.xlu0 %218, %v92
    %v220 = vpop.permute.xlu0 %219
    %223 = vset.pattern.permute.xlu0 0
    %224 = vperm.xlu0 %223, %v93
    %v225 = vpop.permute.xlu0 %224
    %228 = vset.pattern.permute.xlu0 0
    %229 = vperm.xlu0 %228, %v94
    %v230 = vpop.permute.xlu0 %229
    %233 = vset.pattern.permute.xlu0 0
    %234 = vperm.xlu0 %233, %v95
    %v235 = vpop.permute.xlu0 %234
    %238 = vset.pattern.permute.xlu0 0
    %239 = vperm.xlu0 %238, %v96
    %v240 = vpop.permute.xlu0 %239
    %243 = vset.pattern.permute.xlu0 0
    %244 = vperm.xlu0 %243, %v97
    %v245 = vpop.permute.xlu0 %244
    %248 = vset.pattern.permute.xlu0 0
    %249 = vperm.xlu0 %248, %v98
    %v250 = vpop.permute.xlu0 %249
    %253 = vset.pattern.permute.xlu0 0
    %254 = vperm.xlu0 %253, %v99
    %v255 = vpop.permute.xlu0 %254
    %258 = vset.pattern.permute.xlu0 0
    %259 = vperm.xlu0 %258, %v100
    %v260 = vpop.permute.xlu0 %259
    %263 = vset.pattern.permute.xlu0 0
    %264 = vperm.xlu0 %263, %v101
    %v265 = vpop.permute.xlu0 %264
    %268 = vset.pattern.permute.xlu0 0
    %269 = vperm.xlu0 %268, %v102
    %v270 = vpop.permute.xlu0 %269
    %273 = vset.pattern.permute.xlu0 0
    %274 = vperm.xlu0 %273, %v103
    %v275 = vpop.permute.xlu0 %274
    %278 = vset.pattern.permute.xlu0 0
    %279 = vperm.xlu0 %278, %v104
    %v280 = vpop.permute.xlu0 %279
    %283 = vset.pattern.permute.xlu0 0
    %284 = vperm.xlu0 %283, %v105
    %v285 = vpop.permute.xlu0 %284
    %288 = vset.pattern.permute.xlu0 0
    %289 = vperm.xlu0 %288, %v106
    %v290 = vpop.permute.xlu0 %289
    %293 = vset.pattern.permute.xlu0 0
    %294 = vperm.xlu0 %293, %v107
    %v295 = vpop.permute.xlu0 %294
    %298 = vset.pattern.permute.xlu0 0
    %299 = vperm.xlu0 %298, %v108
    %v300 = vpop.permute.xlu0 %299
    %303 = vset.pattern.permute.xlu0 0
    %304 = vperm.xlu0 %303, %v109
    %v305 = vpop.permute.xlu0 %304
    %308 = vset.pattern.permute.xlu0 0
    %309 = vperm.xlu0 %308, %v110
    %v310 = vpop.permute.xlu0 %309
    %313 = vset.pattern.permute.xlu0 0
    %314 = vperm.xlu0 %313, %v111
    %v315 = vpop.permute.xlu0 %314
    %318 = vset.pattern.permute.xlu0 0
    %319 = vperm.xlu0 %318, %v112
    %v320 = vpop.permute.xlu0 %319
    %323 = vset.pattern.permute.xlu0 0
    %324 = vperm.xlu0 %323, %v113
    %v325 = vpop.permute.xlu0 %324
    %328 = vset.pattern.permute.xlu0 0
    %329 = vperm.xlu0 %328, %v114
    %v330 = vpop.permute.xlu0 %329
    %333 = vset.pattern.permute.xlu0 0
    %334 = vperm.xlu0 %333, %v115
    %v335 = vpop.permute.xlu0 %334
    %338 = vset.pattern.permute.xlu0 0
    %339 = vperm.xlu0 %338, %v116
    %v340 = vpop.permute.xlu0 %339
    %343 = vset.pattern.permute.xlu0 0
    %344 = vperm.xlu0 %343, %v117
    %v345 = vpop.permute.xlu0 %344
    %348 = vset.pattern.permute.xlu0 0
    %349 = vperm.xlu0 %348, %v118
    %v350 = vpop.permute.xlu0 %349
    %353 = vset.pattern.permute.xlu0 0
    %354 = vperm.xlu0 %353, %v119
    %v355 = vpop.permute.xlu0 %354
    %358 = vset.pattern.permute.xlu0 0
    %359 = vperm.xlu0 %358, %v120
    %v360 = vpop.permute.xlu0 %359
    %363 = vset.pattern.permute.xlu0 0
    %364 = vperm.xlu0 %363, %v121
    %v365 = vpop.permute.xlu0 %364
    %368 = vset.pattern.permute.xlu0 0
    %369 = vperm.xlu0 %368, %v122
    %v370 = vpop.permute.xlu0 %369
    %373 = vset.pattern.permute.xlu0 0
    %374 = vperm.xlu0 %373, %v123
    %v375 = vpop.permute.xlu0 %374
    %378 = vset.pattern.permute.xlu0 0
    %379 = vperm.xlu0 %378, %v124
    %v380 = vpop.permute.xlu0 %379
    %383 = vset.pattern.permute.xlu0 0
    %384 = vperm.xlu0 %383, %v125
    %v385 = vpop.permute.xlu0 %384
    %388 = vset.pattern.permute.xlu0 0
    %389 = vperm.xlu0 %388, %v126
    %v390 = vpop.permute.xlu0 %389
    %393 = vset.pattern.permute.xlu0 0
    %394 = vperm.xlu0 %393, %v127
    %v395 = vpop.permute.xlu0 %394
    %398 = vset.pattern.permute.xlu0 0
    %399 = vperm.xlu0 %398, %v128
    %v400 = vpop.permute.xlu0 %399
    %403 = vset.pattern.permute.xlu0 0
    %404 = vperm.xlu0 %403, %v129
    %v405 = vpop.permute.xlu0 %404
    %408 = vset.pattern.permute.xlu0 0
    %409 = vperm.xlu0 %408, %v130
    %v410 = vpop.permute.xlu0 %409
    %413 = vset.pattern.permute.xlu0 0
    %414 = vperm.xlu0 %413, %v131
    %v415 = vpop.permute.xlu0 %414
    %418 = vset.pattern.permute.xlu0 0
    %419 = vperm.xlu0 %418, %v132
    %v420 = vpop.permute.xlu0 %419
    %423 = vset.pattern.permute.xlu0 0
    %424 = vperm.xlu0 %423, %v133
    %v425 = vpop.permute.xlu0 %424
    %428 = vset.pattern.permute.xlu0 0
    %429 = vperm.xlu0 %428, %v134
    %v430 = vpop.permute.xlu0 %429
    %433 = vset.pattern.permute.xlu0 0
    %434 = vperm.xlu0 %433, %v135
    %v435 = vpop.permute.xlu0 %434
    %438 = vset.pattern.permute.xlu0 0
    %439 = vperm.xlu0 %438, %v136
    %v440 = vpop.permute.xlu0 %439
    %443 = vset.pattern.permute.xlu0 0
    %444 = vperm.xlu0 %443, %v137
    %v445 = vpop.permute.xlu0 %444
    %448 = vset.pattern.permute.xlu0 0
    %449 = vperm.xlu0 %448, %v138
    %v450 = vpop.permute.xlu0 %449
    %453 = vset.pattern.permute.xlu0 0
    %454 = vperm.xlu0 %453, %v139
    %v455 = vpop.permute.xlu0 %454
    %458 = vset.pattern.permute.xlu0 0
    %459 = vperm.xlu0 %458, %v140
    %v460 = vpop.permute.xlu0 %459
    %463 = vset.pattern.permute.xlu0 0
    %464 = vperm.xlu0 %463, %v141
    %v465 = vpop.permute.xlu0 %464
    %v467 = vmul.f32 %v12, %v145
    %v468 = vmul.f32 %v13, %v150
    %v469 = vmul.f32 %v14, %v155
    %v470 = vmul.f32 %v15, %v160
    %v471 = vmul.f32 %v16, %v165
    %v472 = vmul.f32 %v17, %v170
    %v473 = vmul.f32 %v18, %v175
    %v474 = vmul.f32 %v19, %v180
    %v475 = vmul.f32 %v20, %v185
    %v476 = vmul.f32 %v21, %v190
    %v477 = vmul.f32 %v22, %v195
    %v478 = vmul.f32 %v23, %v200
    %v479 = vmul.f32 %v24, %v205
    %v480 = vmul.f32 %v25, %v210
    %v481 = vmul.f32 %v26, %v215
    %v482 = vmul.f32 %v27, %v220
    %v483 = vmul.f32 %v28, %v225
    %v484 = vmul.f32 %v29, %v230
    %v485 = vmul.f32 %v30, %v235
    %v486 = vmul.f32 %v31, %v240
    %v487 = vmul.f32 %v32, %v245
    %v488 = vmul.f32 %v33, %v250
    %v489 = vmul.f32 %v34, %v255
    %v490 = vmul.f32 %v35, %v260
    %v491 = vmul.f32 %v36, %v265
    %v492 = vmul.f32 %v37, %v270
    %v493 = vmul.f32 %v38, %v275
    %v494 = vmul.f32 %v39, %v280
    %v495 = vmul.f32 %v40, %v285
    %v496 = vmul.f32 %v41, %v290
    %v497 = vmul.f32 %v42, %v295
    %v498 = vmul.f32 %v43, %v300
    %v499 = vmul.f32 %v44, %v305
    %v500 = vmul.f32 %v45, %v310
    %v501 = vmul.f32 %v46, %v315
    %v502 = vmul.f32 %v47, %v320
    %v503 = vmul.f32 %v48, %v325
    %v504 = vmul.f32 %v49, %v330
    %v505 = vmul.f32 %v50, %v335
    %v506 = vmul.f32 %v51, %v340
    %v507 = vmul.f32 %v52, %v345
    %v508 = vmul.f32 %v53, %v350
    %v509 = vmul.f32 %v54, %v355
    %v510 = vmul.f32 %v55, %v360
    %v511 = vmul.f32 %v56, %v365
    %v512 = vmul.f32 %v57, %v370
    %v513 = vmul.f32 %v58, %v375
    %v514 = vmul.f32 %v59, %v380
    %v515 = vmul.f32 %v60, %v385
    %v516 = vmul.f32 %v61, %v390
    %v517 = vmul.f32 %v62, %v395
    %v518 = vmul.f32 %v63, %v400
    %v519 = vmul.f32 %v64, %v405
    %v520 = vmul.f32 %v65, %v410
    %v521 = vmul.f32 %v66, %v415
    %v522 = vmul.f32 %v67, %v420
    %v523 = vmul.f32 %v68, %v425
    %v524 = vmul.f32 %v69, %v430
    %v525 = vmul.f32 %v70, %v435
    %v526 = vmul.f32 %v71, %v440
    %v527 = vmul.f32 %v72, %v445
    %v528 = vmul.f32 %v73, %v450
    %v529 = vmul.f32 %v74, %v455
    %v530 = vmul.f32 %v75, %v460
    %v531 = vmul.f32 %v76, %v465
    %532 = vst [vmem:[#allocation2] sm:$0xff] %v467
    %533 = vst [vmem:[#allocation2 + $0x8] sm:$0xff] %v468
    %534 = vst [vmem:[#allocation2 + $0x10] sm:$0xff] %v469
    %535 = vst [vmem:[#allocation2 + $0x18] sm:$0xff] %v470
    %536 = vst [vmem:[#allocation2 + $0x20] sm:$0xff] %v471
    %537 = vst [vmem:[#allocation2 + $0x28] sm:$0xff] %v472
    %538 = vst [vmem:[#allocation2 + $0x30] sm:$0xff] %v473
    %539 = vst [vmem:[#allocation2 + $0x38] sm:$0xff] %v474
    %540 = vst [vmem:[#allocation2 + $0x40] sm:$0xff] %v475
    %541 = vst [vmem:[#allocation2 + $0x48] sm:$0xff] %v476
    %542 = vst [vmem:[#allocation2 + $0x50] sm:$0xff] %v477
    %543 = vst [vmem:[#allocation2 + $0x58] sm:$0xff] %v478
    %544 = vst [vmem:[#allocation2 + $0x60] sm:$0xff] %v479
    %545 = vst [vmem:[#allocation2 + $0x68] sm:$0xff] %v480
    %546 = vst [vmem:[#allocation2 + $0x70] sm:$0xff] %v481
    %547 = vst [vmem:[#allocation2 + $0x78] sm:$0xff] %v482
    %548 = vst [vmem:[#allocation2 + $0x80] sm:$0xff] %v483
    %549 = vst [vmem:[#allocation2 + $0x88] sm:$0xff] %v484
    %550 = vst [vmem:[#allocation2 + $0x90] sm:$0xff] %v485
    %551 = vst [vmem:[#allocation2 + $0x98] sm:$0xff] %v486
    %552 = vst [vmem:[#allocation2 + $0xa0] sm:$0xff] %v487
    %553 = vst [vmem:[#allocation2 + $0xa8] sm:$0xff] %v488
    %554 = vst [vmem:[#allocation2 + $0xb0] sm:$0xff] %v489
    %555 = vst [vmem:[#allocation2 + $0xb8] sm:$0xff] %v490
    %556 = vst [vmem:[#allocation2 + $0xc0] sm:$0xff] %v491
    %557 = vst [vmem:[#allocation2 + $0xc8] sm:$0xff] %v492
    %558 = vst [vmem:[#allocation2 + $0xd0] sm:$0xff] %v493
    %559 = vst [vmem:[#allocation2 + $0xd8] sm:$0xff] %v494
    %560 = vst [vmem:[#allocation2 + $0xe0] sm:$0xff] %v495
    %561 = vst [vmem:[#allocation2 + $0xe8] sm:$0xff] %v496
    %562 = vst [vmem:[#allocation2 + $0xf0] sm:$0xff] %v497
    %563 = vst [vmem:[#allocation2 + $0xf8] sm:$0xff] %v498
    %564 = vst [vmem:[#allocation2 + $0x100] sm:$0xff] %v499
    %565 = vst [vmem:[#allocation2 + $0x108] sm:$0xff] %v500
    %566 = vst [vmem:[#allocation2 + $0x110] sm:$0xff] %v501
    %567 = vst [vmem:[#allocation2 + $0x118] sm:$0xff] %v502
    %568 = vst [vmem:[#allocation2 + $0x120] sm:$0xff] %v503
    %569 = vst [vmem:[#allocation2 + $0x128] sm:$0xff] %v504
    %570 = vst [vmem:[#allocation2 + $0x130] sm:$0xff] %v505
    %571 = vst [vmem:[#allocation2 + $0x138] sm:$0xff] %v506
    %572 = vst [vmem:[#allocation2 + $0x140] sm:$0xff] %v507
    %573 = vst [vmem:[#allocation2 + $0x148] sm:$0xff] %v508
    %574 = vst [vmem:[#allocation2 + $0x150] sm:$0xff] %v509
    %575 = vst [vmem:[#allocation2 + $0x158] sm:$0xff] %v510
    %576 = vst [vmem:[#allocation2 + $0x160] sm:$0xff] %v511
    %577 = vst [vmem:[#allocation2 + $0x168] sm:$0xff] %v512
    %578 = vst [vmem:[#allocation2 + $0x170] sm:$0xff] %v513
    %579 = vst [vmem:[#allocation2 + $0x178] sm:$0xff] %v514
    %580 = vst [vmem:[#allocation2 + $0x180] sm:$0xff] %v515
    %581 = vst [vmem:[#allocation2 + $0x188] sm:$0xff] %v516
    %582 = vst [vmem:[#allocation2 + $0x190] sm:$0xff] %v517
    %583 = vst [vmem:[#allocation2 + $0x198] sm:$0xff] %v518
    %584 = vst [vmem:[#allocation2 + $0x1a0] sm:$0xff] %v519
    %585 = vst [vmem:[#allocation2 + $0x1a8] sm:$0xff] %v520
    %586 = vst [vmem:[#allocation2 + $0x1b0] sm:$0xff] %v521
    %587 = vst [vmem:[#allocation2 + $0x1b8] sm:$0xff] %v522
    %588 = vst [vmem:[#allocation2 + $0x1c0] sm:$0xff] %v523
    %589 = vst [vmem:[#allocation2 + $0x1c8] sm:$0xff] %v524
    %590 = vst [vmem:[#allocation2 + $0x1d0] sm:$0xff] %v525
    %591 = vst [vmem:[#allocation2 + $0x1d8] sm:$0xff] %v526
    %592 = vst [vmem:[#allocation2 + $0x1e0] sm:$0xff] %v527
    %593 = vst [vmem:[#allocation2 + $0x1e8] sm:$0xff] %v528
    %594 = vst [vmem:[#allocation2 + $0x1f0] sm:$0xff] %v529
    %595 = vst [vmem:[#allocation2 + $0x1f8] sm:$0xff] %v530
    %596 = vst [vmem:[#allocation2 + $0x200] sm:$0xff] %v531
    // Predicated region
    $region10: #{tpu_custom_call.1} parent=1 // pred_check
      _
    $region11: #{tpu_custom_call.1} parent=1 // pred_check_branch
      %598 = sbr.rel (0) target = $region13
    $region12: #{tpu_custom_call.1} parent=1 // pred_region
      %s600 = ssub.s32 8320, 8320
      %601 = vsyncadd [#allocation3], %s600
      %s602 = sshll.u32 [#allocation2], 4
      %s603 = int_to_ptr.vmem [resolvable:$true] %s602
      %608 = dma.vmem_to_hbm [thread:$0]  %s603, 8320, %s2, [#allocation3], 128, 128, 8
    $region13: #{tpu_custom_call.1} parent=1 // pred_fallthru
      _
    // Predicated region
    $region14: #{tpu_custom_call.1} parent=1 // pred_check
      _
    $region15: #{tpu_custom_call.1} parent=1 // pred_check_branch
      %610 = sbr.rel (0) target = $region17
    $region16: #{tpu_custom_call.1} parent=1 // pred_region
      %611 = dma.done [#allocation3], 8320
    $region17: #{tpu_custom_call.1} parent=1 // pred_fallthru
      _
    %612 = vsyncpa [#allocation3], 1

</llo_original>
